<compile_context>
chip_gen: v7x
topology: tpu7x:2x2x1
jax: 0.10.0
libtpu: 0.0.40
codegen_flags: <defaults>
</compile_context>

<pallas_src>
import jax
import jax.numpy as jnp
from jax import lax
from jax.experimental import pallas as pl
from jax.experimental.pallas import tpu as pltpu

BN_EPS = 1e-5
LANE = 128      # padded feature width for hidden / output / latent blocks
SUB = 8         # sublane group


def _round_up(n, m):
    return ((n + m - 1) // m) * m


def _sigmoid(x):
    # exp -> EUP; approx reciprocal -> EUP (vrcp); one Newton step on the VALU
    # (which has slack in this MXU/EUP-latency-bound kernel) restores ~f32
    # accuracy.  Assumes exp(-x) stays finite (|x| << 88), true for these
    # BN-normalised / sigmoid-bounded activations.
    d = 1.0 + jnp.exp(-x)
    r = pl.reciprocal(d, approx=True)
    return r * (2.0 - d * r)


def _bn_sigmoid(h, gamma, beta):
    # Training-mode BatchNorm1d (biased variance) folded to one scale/shift,
    # one-pass statistics.  NOTE: mean(h*h)-mean^2 can cancel when |mean|>>std;
    # fine for random-init magnitudes, revisit for trained weights.
    mean = jnp.mean(h, axis=0, keepdims=True)
    mean_sq = jnp.mean(h * h, axis=0, keepdims=True)
    var = jnp.maximum(mean_sq - mean * mean, 0.0)
    scale = gamma * lax.rsqrt(var + BN_EPS)
    shift = beta - mean * scale
    return _sigmoid(h * scale + shift)


def _dot_bf16(a_f32, w_bf16):
    # bf16 MXU pass with f32 accumulation; activations stay f32 elsewhere.
    return jnp.dot(a_f32.astype(jnp.bfloat16), w_bf16,
                   preferred_element_type=jnp.float32)


# Row indices into the packed per-feature-vector operand (pre-broadcast to the
# batch sublanes at pack time).
(V_GAMMA_E, V_BETA_E, V_B2E, V_BM, V_BLV,
 V_GAMMA_D, V_BETA_D, V_B2D, V_B3D) = range(9)


def cvae_kernel(x_ref, l_ref, eps_ref, w1_ref, wb_ref, vecs_ref, out_ref):
    xp = x_ref.shape[1]            # x lanes (padded to a multiple of 8)
    lp = l_ref.shape[1]            # label lanes (padded to a multiple of 8)

    x = x_ref[...]
    l = l_ref[...]

    # ---------------- Encoder ----------------
    # Linear(input_dim -> hidden) on the implicit concat [x | l]: one merged W1
    # operand, 8-row-aligned static views, two MXU pushes.  First-layer bias is
    # dropped: BatchNorm's batch-mean subtraction cancels it exactly.
    h = (jnp.dot(x, w1_ref[0:xp, :], preferred_element_type=jnp.float32)
         + jnp.dot(l, w1_ref[xp:xp + lp, :], preferred_element_type=jnp.float32))
    h = _bn_sigmoid(h, vecs_ref[V_GAMMA_E], vecs_ref[V_BETA_E])

    # Linear(hidden -> hidden) + Sigmoid   (hidden_layers - 1 == 1 block)
    h = _sigmoid(_dot_bf16(h, wb_ref[:, 0:LANE]) + vecs_ref[V_B2E])

    # mean / logvar heads; each head is padded to a full 128-lane block so no
    # sub-128 lane slicing is ever needed downstream.
    mean_blk = _dot_bf16(h, wb_ref[:, LANE:2 * LANE]) + vecs_ref[V_BM]
    logvar_blk = _dot_bf16(h, wb_ref[:, 2 * LANE:3 * LANE]) + vecs_ref[V_BLV]

    # ---------------- Reparameterize ----------------
    # z = mean + exp(0.5 * logvar) * eps.  Lanes >= latent_dim carry junk but
    # only ever multiply zero rows of W1d_z below, so they never leak.
    z_blk = mean_blk + jnp.exp(0.5 * logvar_blk) * eps_ref[...]

    # ---------------- Decoder ----------------
    # Linear(latent+label -> hidden) on the implicit concat [z | l]; the bias
    # is again cancelled by the following BatchNorm.
    h = (_dot_bf16(z_blk, wb_ref[:, 3 * LANE:4 * LANE])
         + jnp.dot(l, w1_ref[xp + lp:xp + 2 * lp, :],
                   preferred_element_type=jnp.float32))
    h = _bn_sigmoid(h, vecs_ref[V_GAMMA_D], vecs_ref[V_BETA_D])
    h = _sigmoid(_dot_bf16(h, wb_ref[:, 4 * LANE:5 * LANE]) + vecs_ref[V_B2D])
    y = _sigmoid(_dot_bf16(h, wb_ref[:, 5 * LANE:6 * LANE]) + vecs_ref[V_B3D])

    # Lane-dense packed store: [ t | mean | logvar ], three 128-lane blocks.
    out_ref[:, 0:LANE] = y
    out_ref[:, LANE:2 * LANE] = mean_blk
    out_ref[:, 2 * LANE:3 * LANE] = logvar_blk


def pack_cvae_params(raw, x_dim, l_dim, latent_dim, batch):
    """One-time parameter prep (see header for the feedback-driven layout)."""
    H = raw["enc_w2"].shape[0]
    O = raw["dec_w3"].shape[1]
    assert H <= LANE and O <= LANE and latent_dim <= LANE, \
        "toy-size packing; see TODO(synk) scaling plan"
    xp = _round_up(x_dim, SUB)
    lp = _round_up(l_dim, SUB)

    def blk(w):   # pad a [K<=128, N<=128] weight to a [128, 128] block
        return jnp.pad(w, ((0, LANE - w.shape[0]), (0, LANE - w.shape[1])))

    def vec(v):   # pad a [1, n] vector to 128 lanes, pre-broadcast to batch rows
        v = jnp.pad(v.reshape(1, -1), ((0, 0), (0, LANE - v.size)))
        return jnp.broadcast_to(v, (batch, LANE))

    # merged first-layer weights (kept f32: tiny, keeps the odd-K dots exact)
    w1 = jnp.zeros((xp + 2 * lp, LANE), jnp.float32)
    w1 = w1.at[0:x_dim, 0:H].set(raw["enc_w1"][:x_dim])
    w1 = w1.at[xp:xp + l_dim, 0:H].set(raw["enc_w1"][x_dim:])
    w1 = w1.at[xp + lp:xp + lp + l_dim, 0:H].set(raw["dec_w1"][latent_dim:])

    # one big lane-concatenated bf16 weight operand: [128, 6*128]
    wbig = jnp.concatenate(
        [blk(raw["enc_w2"]), blk(raw["enc_wm"]), blk(raw["enc_wlv"]),
         blk(raw["dec_w1"][:latent_dim]), blk(raw["dec_w2"]), blk(raw["dec_w3"])],
        axis=1).astype(jnp.bfloat16)

    vecs = jnp.stack(
        [vec(raw["enc_gamma"]), vec(raw["enc_beta"]), vec(raw["enc_b2"]),
         vec(raw["enc_bm"]), vec(raw["enc_blv"]),
         vec(raw["dec_gamma"]), vec(raw["dec_beta"]), vec(raw["dec_b2"]),
         vec(raw["dec_b3"])], axis=0)                       # [9, batch, 128]

    return {"w1": w1, "wbig": wbig, "vecs": vecs,
            "x_pad": xp, "l_pad": lp,
            "latent_dim": latent_dim, "output_dim": O}


def cvae_forward(x, l, eps, packed):
    """x: [B, x_dim], l: [B, l_dim], eps: [B, 128] N(0,1) noise (only the first
    latent_dim lanes are used).  Returns (t, mean, logvar)."""
    B = x.shape[0]
    assert B % SUB == 0, \
        "batch must be a multiple of 8; padded rows would corrupt BN stats"
    xp, lp = packed["x_pad"], packed["l_pad"]
    if x.shape[1] != xp:
        x = jnp.pad(x, ((0, 0), (0, xp - x.shape[1])))
    if l.shape[1] != lp:
        l = jnp.pad(l, ((0, 0), (0, lp - l.shape[1])))

    vmem = pl.BlockSpec(memory_space=pltpu.MemorySpace.VMEM)
    out = pl.pallas_call(
        cvae_kernel,
        out_shape=jax.ShapeDtypeStruct((B, 3 * LANE), jnp.float32),
        in_specs=[vmem] * 6,
        out_specs=vmem,
    )(x, l, eps, packed["w1"], packed["wbig"], packed["vecs"])

    Ld, O = packed["latent_dim"], packed["output_dim"]
    t = out[:, :O]
    mean = out[:, LANE:LANE + Ld]
    logvar = out[:, 2 * LANE:2 * LANE + Ld]
    return t, mean, logvar


def init_params(key, x_dim, l_dim, latent_dim, hidden_dim, output_dim):
    """Deterministic synthetic init (PyTorch-Linear-style uniform ranges)."""
    ks = jax.random.split(key, 14)

    def lin(kw, kb, fan_in, fan_out):
        bound = 1.0 / jnp.sqrt(jnp.float32(fan_in))
        w = jax.random.uniform(kw, (fan_in, fan_out), jnp.float32, -bound, bound)
        b = jax.random.uniform(kb, (1, fan_out), jnp.float32, -bound, bound)
        return w, b

    enc_w1, enc_b1 = lin(ks[0], ks[1], x_dim + l_dim, hidden_dim)
    enc_w2, enc_b2 = lin(ks[2], ks[3], hidden_dim, hidden_dim)
    enc_wm, enc_bm = lin(ks[4], ks[5], hidden_dim, latent_dim)
    enc_wlv, enc_blv = lin(ks[6], ks[7], hidden_dim, latent_dim)
    dec_w1, dec_b1 = lin(ks[8], ks[9], latent_dim + l_dim, hidden_dim)
    dec_w2, dec_b2 = lin(ks[10], ks[11], hidden_dim, hidden_dim)
    dec_w3, dec_b3 = lin(ks[12], ks[13], hidden_dim, output_dim)
    ones = jnp.ones((1, hidden_dim), jnp.float32)     # BatchNorm1d defaults
    zeros = jnp.zeros((1, hidden_dim), jnp.float32)
    return {
        "enc_w1": enc_w1, "enc_b1": enc_b1,           # b1 used only by the reference
        "enc_gamma": ones, "enc_beta": zeros,
        "enc_w2": enc_w2, "enc_b2": enc_b2,
        "enc_wm": enc_wm, "enc_bm": enc_bm,
        "enc_wlv": enc_wlv, "enc_blv": enc_blv,
        "dec_w1": dec_w1, "dec_b1": dec_b1,           # b1 used only by the reference
        "dec_gamma": ones, "dec_beta": zeros,
        "dec_w2": dec_w2, "dec_b2": dec_b2,
        "dec_w3": dec_w3, "dec_b3": dec_b3,
    }


def cvae_reference(x, l, eps, raw):
    """Pure-JAX f32 mirror of the PyTorch cVAE.forward (training-mode BN)."""
    def bn(h, gamma, beta):
        mean = jnp.mean(h, axis=0, keepdims=True)
        var = jnp.mean((h - mean) ** 2, axis=0, keepdims=True)
        return gamma * (h - mean) / jnp.sqrt(var + BN_EPS) + beta

    te = jnp.concatenate([x, l], axis=1)
    h = te @ raw["enc_w1"] + raw["enc_b1"]
    h = jax.nn.sigmoid(bn(h, raw["enc_gamma"], raw["enc_beta"]))
    h = jax.nn.sigmoid(h @ raw["enc_w2"] + raw["enc_b2"])
    mean = h @ raw["enc_wm"] + raw["enc_bm"]
    logvar = h @ raw["enc_wlv"] + raw["enc_blv"]
    z = mean + jnp.exp(0.5 * logvar) * eps
    td = jnp.concatenate([z, l], axis=1)
    h = td @ raw["dec_w1"] + raw["dec_b1"]
    h = jax.nn.sigmoid(bn(h, raw["dec_gamma"], raw["dec_beta"]))
    h = jax.nn.sigmoid(h @ raw["dec_w2"] + raw["dec_b2"])
    t = jax.nn.sigmoid(h @ raw["dec_w3"] + raw["dec_b3"])
    return t, mean, logvar


if __name__ == "__main__":
    B = 8                       # multiple of 8 sublanes; batch to 128 (v5e) /
                                # 256 (v6e, v7x) rows in production (same BN batch)
    x_dim, l_dim = 16, 4        # data features, label features
    latent_dim = 4              # cVAE latent ("inner") dimension
    hidden_dim = 32
    output_dim = 16

    key = jax.random.PRNGKey(0)
    kx, kl, ke, kp = jax.random.split(key, 4)
    x = jax.random.normal(kx, (B, x_dim), jnp.float32)
    l = (jax.random.uniform(kl, (B, l_dim)) > 0.5).astype(jnp.float32)
    # reparameterization noise; only the first latent_dim lanes are used
    eps = jax.random.normal(ke, (B, LANE), jnp.float32)

    raw = init_params(kp, x_dim, l_dim, latent_dim, hidden_dim, output_dim)
    packed = pack_cvae_params(raw, x_dim, l_dim, latent_dim, batch=B)

    t, mean, logvar = cvae_forward(x, l, eps, packed)
    jax.block_until_ready((t, mean, logvar))
    assert t.shape == (B, output_dim)
    assert mean.shape == (B, latent_dim) and logvar.shape == (B, latent_dim)

    # Tolerance-checked reference (bf16 weight blocks, one-pass variance and
    # the exact-in-real-arithmetic b1 drop perturb slightly; the Newton step
    # removes the approx-reciprocal error).
    t_ref, mean_ref, logvar_ref = cvae_reference(x, l, eps[:, :latent_dim], raw)
    err = max(float(jnp.max(jnp.abs(t - t_ref))),
              float(jnp.max(jnp.abs(mean - mean_ref))),
              float(jnp.max(jnp.abs(logvar - logvar_ref))))
    assert err < 5e-2, f"mismatch vs reference: {err}"
    print("KERNEL_OK")
</pallas_src>

<mosaic_0001>
module attributes {stable_mosaic.version = 11 : i64} {
  func.func @cvae_kernel(%arg0: memref<8x16xf32, #tpu.memory_space<vmem>>, %arg1: memref<8x8xf32, #tpu.memory_space<vmem>>, %arg2: memref<8x128xf32, #tpu.memory_space<vmem>>, %arg3: memref<32x128xf32, #tpu.memory_space<vmem>>, %arg4: memref<128x768xbf16, #tpu.memory_space<vmem>>, %arg5: memref<9x8x128xf32, #tpu.memory_space<vmem>>, %arg6: memref<8x384xf32, #tpu.memory_space<vmem>>) attributes {dimension_semantics = [], scalar_prefetch = 0 : i64, scratch_operands = 0 : i64, tpu.core_type = #tpu.core_type<tc>} {
    %c0 = arith.constant 0 : index
    %c0_0 = arith.constant 0 : index
    %0 = vector.load %arg0[%c0, %c0_0] : memref<8x16xf32, #tpu.memory_space<vmem>>, vector<8x16xf32>
    %c0_1 = arith.constant 0 : index
    %c0_2 = arith.constant 0 : index
    %1 = vector.load %arg1[%c0_1, %c0_2] : memref<8x8xf32, #tpu.memory_space<vmem>>, vector<8x8xf32>
    %c0_3 = arith.constant 0 : index
    %c0_4 = arith.constant 0 : index
    %2 = vector.load %arg3[%c0_3, %c0_4] : memref<32x128xf32, #tpu.memory_space<vmem>>, vector<16x128xf32>
    %cst = arith.constant dense<0.000000e+00> : vector<8x128xf32>
    %3 = tpu.matmul %0, %2, %cst {dimension_numbers = #tpu.dot_dimension_numbers<[1], [0], [0], [1], [0, 0, 1, 1], [], []>} : vector<8x16xf32>, vector<16x128xf32>, vector<8x128xf32> -> vector<8x128xf32>
    %c16 = arith.constant 16 : index
    %c0_5 = arith.constant 0 : index
    %4 = vector.load %arg3[%c16, %c0_5] : memref<32x128xf32, #tpu.memory_space<vmem>>, vector<8x128xf32>
    %cst_6 = arith.constant dense<0.000000e+00> : vector<8x128xf32>
    %5 = tpu.matmul %1, %4, %cst_6 {dimension_numbers = #tpu.dot_dimension_numbers<[1], [0], [0], [1], [0, 0, 1, 1], [], []>} : vector<8x8xf32>, vector<8x128xf32>, vector<8x128xf32> -> vector<8x128xf32>
    %6 = arith.addf %3, %5 : vector<8x128xf32>
    %c0_7 = arith.constant 0 : index
    %c0_8 = arith.constant 0 : index
    %c0_9 = arith.constant 0 : index
    %7 = vector.load %arg5[%c0_7, %c0_8, %c0_9] : memref<9x8x128xf32, #tpu.memory_space<vmem>>, vector<1x8x128xf32>
    %8 = vector.shape_cast %7 : vector<1x8x128xf32> to vector<8x128xf32>
    %c1 = arith.constant 1 : index
    %c0_10 = arith.constant 0 : index
    %c0_11 = arith.constant 0 : index
    %9 = vector.load %arg5[%c1, %c0_10, %c0_11] : memref<9x8x128xf32, #tpu.memory_space<vmem>>, vector<1x8x128xf32>
    %10 = vector.shape_cast %9 : vector<1x8x128xf32> to vector<8x128xf32>
    %cst_12 = arith.constant dense<0.000000e+00> : vector<128xf32>
    %11 = vector.multi_reduction <add>, %6, %cst_12 [0] : vector<8x128xf32> to vector<128xf32>
    %12 = vector.shape_cast %11 : vector<128xf32> to vector<1x128xf32>
    %cst_13 = arith.constant 8.000000e+00 : f32
    %13 = vector.broadcast %cst_13 : f32 to vector<1x128xf32>
    %14 = arith.divf %12, %13 : vector<1x128xf32>
    %15 = arith.mulf %6, %6 : vector<8x128xf32>
    %cst_14 = arith.constant dense<0.000000e+00> : vector<128xf32>
    %16 = vector.multi_reduction <add>, %15, %cst_14 [0] : vector<8x128xf32> to vector<128xf32>
    %17 = vector.shape_cast %16 : vector<128xf32> to vector<1x128xf32>
    %cst_15 = arith.constant 8.000000e+00 : f32
    %18 = vector.broadcast %cst_15 : f32 to vector<1x128xf32>
    %19 = arith.divf %17, %18 : vector<1x128xf32>
    %20 = arith.mulf %14, %14 : vector<1x128xf32>
    %21 = arith.subf %19, %20 : vector<1x128xf32>
    %cst_16 = arith.constant 0.000000e+00 : f32
    %22 = vector.broadcast %cst_16 : f32 to vector<1x128xf32>
    %23 = arith.maximumf %21, %22 : vector<1x128xf32>
    %cst_17 = arith.constant 9.99999974E-6 : f32
    %24 = vector.broadcast %cst_17 : f32 to vector<1x128xf32>
    %25 = arith.addf %23, %24 : vector<1x128xf32>
    %26 = math.rsqrt %25 : vector<1x128xf32>
    %27 = vector.broadcast %26 : vector<1x128xf32> to vector<8x128xf32>
    %28 = arith.mulf %8, %27 : vector<8x128xf32>
    %29 = vector.broadcast %14 : vector<1x128xf32> to vector<8x128xf32>
    %30 = arith.mulf %29, %28 : vector<8x128xf32>
    %31 = arith.subf %10, %30 : vector<8x128xf32>
    %32 = arith.mulf %6, %28 : vector<8x128xf32>
    %33 = arith.addf %32, %31 : vector<8x128xf32>
    %cst_18 = arith.constant 0.000000e+00 : f32
    %34 = vector.broadcast %cst_18 : f32 to vector<8x128xf32>
    %35 = arith.subf %34, %33 : vector<8x128xf32>
    %36 = math.exp %35 : vector<8x128xf32>
    %cst_19 = arith.constant 1.000000e+00 : f32
    %37 = vector.broadcast %cst_19 : f32 to vector<8x128xf32>
    %38 = arith.addf %37, %36 : vector<8x128xf32>
    %39 = tpu.reciprocal %38 {approx = true} : vector<8x128xf32> -> vector<8x128xf32>
    %40 = arith.mulf %38, %39 : vector<8x128xf32>
    %cst_20 = arith.constant 2.000000e+00 : f32
    %41 = vector.broadcast %cst_20 : f32 to vector<8x128xf32>
    %42 = arith.subf %41, %40 : vector<8x128xf32>
    %43 = arith.mulf %39, %42 : vector<8x128xf32>
    %c0_21 = arith.constant 0 : index
    %c0_22 = arith.constant 0 : index
    %44 = vector.load %arg4[%c0_21, %c0_22] : memref<128x768xbf16, #tpu.memory_space<vmem>>, vector<128x128xbf16>
    %45 = arith.truncf %43 : vector<8x128xf32> to vector<8x128xbf16>
    %cst_23 = arith.constant dense<0.000000e+00> : vector<8x128xf32>
    %46 = tpu.matmul %45, %44, %cst_23 {dimension_numbers = #tpu.dot_dimension_numbers<[1], [0], [0], [1], [0, 0, 1, 1], [], []>} : vector<8x128xbf16>, vector<128x128xbf16>, vector<8x128xf32> -> vector<8x128xf32>
    %c2 = arith.constant 2 : index
    %c0_24 = arith.constant 0 : index
    %c0_25 = arith.constant 0 : index
    %47 = vector.load %arg5[%c2, %c0_24, %c0_25] : memref<9x8x128xf32, #tpu.memory_space<vmem>>, vector<1x8x128xf32>
    %48 = vector.shape_cast %47 : vector<1x8x128xf32> to vector<8x128xf32>
    %49 = arith.addf %46, %48 : vector<8x128xf32>
    %cst_26 = arith.constant 0.000000e+00 : f32
    %50 = vector.broadcast %cst_26 : f32 to vector<8x128xf32>
    %51 = arith.subf %50, %49 : vector<8x128xf32>
    %52 = math.exp %51 : vector<8x128xf32>
    %cst_27 = arith.constant 1.000000e+00 : f32
    %53 = vector.broadcast %cst_27 : f32 to vector<8x128xf32>
    %54 = arith.addf %53, %52 : vector<8x128xf32>
    %55 = tpu.reciprocal %54 {approx = true} : vector<8x128xf32> -> vector<8x128xf32>
    %56 = arith.mulf %54, %55 : vector<8x128xf32>
    %cst_28 = arith.constant 2.000000e+00 : f32
    %57 = vector.broadcast %cst_28 : f32 to vector<8x128xf32>
    %58 = arith.subf %57, %56 : vector<8x128xf32>
    %59 = arith.mulf %55, %58 : vector<8x128xf32>
    %c0_29 = arith.constant 0 : index
    %c128 = arith.constant 128 : index
    %60 = vector.load %arg4[%c0_29, %c128] : memref<128x768xbf16, #tpu.memory_space<vmem>>, vector<128x128xbf16>
    %61 = arith.truncf %59 : vector<8x128xf32> to vector<8x128xbf16>
    %cst_30 = arith.constant dense<0.000000e+00> : vector<8x128xf32>
    %62 = tpu.matmul %61, %60, %cst_30 {dimension_numbers = #tpu.dot_dimension_numbers<[1], [0], [0], [1], [0, 0, 1, 1], [], []>} : vector<8x128xbf16>, vector<128x128xbf16>, vector<8x128xf32> -> vector<8x128xf32>
    %c3 = arith.constant 3 : index
    %c0_31 = arith.constant 0 : index
    %c0_32 = arith.constant 0 : index
    %63 = vector.load %arg5[%c3, %c0_31, %c0_32] : memref<9x8x128xf32, #tpu.memory_space<vmem>>, vector<1x8x128xf32>
    %64 = vector.shape_cast %63 : vector<1x8x128xf32> to vector<8x128xf32>
    %65 = arith.addf %62, %64 : vector<8x128xf32>
    %c0_33 = arith.constant 0 : index
    %c256 = arith.constant 256 : index
    %66 = vector.load %arg4[%c0_33, %c256] : memref<128x768xbf16, #tpu.memory_space<vmem>>, vector<128x128xbf16>
    %67 = arith.truncf %59 : vector<8x128xf32> to vector<8x128xbf16>
    %cst_34 = arith.constant dense<0.000000e+00> : vector<8x128xf32>
    %68 = tpu.matmul %67, %66, %cst_34 {dimension_numbers = #tpu.dot_dimension_numbers<[1], [0], [0], [1], [0, 0, 1, 1], [], []>} : vector<8x128xbf16>, vector<128x128xbf16>, vector<8x128xf32> -> vector<8x128xf32>
    %c4 = arith.constant 4 : index
    %c0_35 = arith.constant 0 : index
    %c0_36 = arith.constant 0 : index
    %69 = vector.load %arg5[%c4, %c0_35, %c0_36] : memref<9x8x128xf32, #tpu.memory_space<vmem>>, vector<1x8x128xf32>
    %70 = vector.shape_cast %69 : vector<1x8x128xf32> to vector<8x128xf32>
    %71 = arith.addf %68, %70 : vector<8x128xf32>
    %cst_37 = arith.constant 5.000000e-01 : f32
    %72 = vector.broadcast %cst_37 : f32 to vector<8x128xf32>
    %73 = arith.mulf %72, %71 : vector<8x128xf32>
    %74 = math.exp %73 : vector<8x128xf32>
    %c0_38 = arith.constant 0 : index
    %c0_39 = arith.constant 0 : index
    %75 = vector.load %arg2[%c0_38, %c0_39] : memref<8x128xf32, #tpu.memory_space<vmem>>, vector<8x128xf32>
    %76 = arith.mulf %74, %75 : vector<8x128xf32>
    %77 = arith.addf %65, %76 : vector<8x128xf32>
    %c0_40 = arith.constant 0 : index
    %c384 = arith.constant 384 : index
    %78 = vector.load %arg4[%c0_40, %c384] : memref<128x768xbf16, #tpu.memory_space<vmem>>, vector<128x128xbf16>
    %79 = arith.truncf %77 : vector<8x128xf32> to vector<8x128xbf16>
    %cst_41 = arith.constant dense<0.000000e+00> : vector<8x128xf32>
    %80 = tpu.matmul %79, %78, %cst_41 {dimension_numbers = #tpu.dot_dimension_numbers<[1], [0], [0], [1], [0, 0, 1, 1], [], []>} : vector<8x128xbf16>, vector<128x128xbf16>, vector<8x128xf32> -> vector<8x128xf32>
    %c24 = arith.constant 24 : index
    %c0_42 = arith.constant 0 : index
    %81 = vector.load %arg3[%c24, %c0_42] : memref<32x128xf32, #tpu.memory_space<vmem>>, vector<8x128xf32>
    %cst_43 = arith.constant dense<0.000000e+00> : vector<8x128xf32>
    %82 = tpu.matmul %1, %81, %cst_43 {dimension_numbers = #tpu.dot_dimension_numbers<[1], [0], [0], [1], [0, 0, 1, 1], [], []>} : vector<8x8xf32>, vector<8x128xf32>, vector<8x128xf32> -> vector<8x128xf32>
    %83 = arith.addf %80, %82 : vector<8x128xf32>
    %c5 = arith.constant 5 : index
    %c0_44 = arith.constant 0 : index
    %c0_45 = arith.constant 0 : index
    %84 = vector.load %arg5[%c5, %c0_44, %c0_45] : memref<9x8x128xf32, #tpu.memory_space<vmem>>, vector<1x8x128xf32>
    %85 = vector.shape_cast %84 : vector<1x8x128xf32> to vector<8x128xf32>
    %c6 = arith.constant 6 : index
    %c0_46 = arith.constant 0 : index
    %c0_47 = arith.constant 0 : index
    %86 = vector.load %arg5[%c6, %c0_46, %c0_47] : memref<9x8x128xf32, #tpu.memory_space<vmem>>, vector<1x8x128xf32>
    %87 = vector.shape_cast %86 : vector<1x8x128xf32> to vector<8x128xf32>
    %cst_48 = arith.constant dense<0.000000e+00> : vector<128xf32>
    %88 = vector.multi_reduction <add>, %83, %cst_48 [0] : vector<8x128xf32> to vector<128xf32>
    %89 = vector.shape_cast %88 : vector<128xf32> to vector<1x128xf32>
    %cst_49 = arith.constant 8.000000e+00 : f32
    %90 = vector.broadcast %cst_49 : f32 to vector<1x128xf32>
    %91 = arith.divf %89, %90 : vector<1x128xf32>
    %92 = arith.mulf %83, %83 : vector<8x128xf32>
    %cst_50 = arith.constant dense<0.000000e+00> : vector<128xf32>
    %93 = vector.multi_reduction <add>, %92, %cst_50 [0] : vector<8x128xf32> to vector<128xf32>
    %94 = vector.shape_cast %93 : vector<128xf32> to vector<1x128xf32>
    %cst_51 = arith.constant 8.000000e+00 : f32
    %95 = vector.broadcast %cst_51 : f32 to vector<1x128xf32>
    %96 = arith.divf %94, %95 : vector<1x128xf32>
    %97 = arith.mulf %91, %91 : vector<1x128xf32>
    %98 = arith.subf %96, %97 : vector<1x128xf32>
    %cst_52 = arith.constant 0.000000e+00 : f32
    %99 = vector.broadcast %cst_52 : f32 to vector<1x128xf32>
    %100 = arith.maximumf %98, %99 : vector<1x128xf32>
    %cst_53 = arith.constant 9.99999974E-6 : f32
    %101 = vector.broadcast %cst_53 : f32 to vector<1x128xf32>
    %102 = arith.addf %100, %101 : vector<1x128xf32>
    %103 = math.rsqrt %102 : vector<1x128xf32>
    %104 = vector.broadcast %103 : vector<1x128xf32> to vector<8x128xf32>
    %105 = arith.mulf %85, %104 : vector<8x128xf32>
    %106 = vector.broadcast %91 : vector<1x128xf32> to vector<8x128xf32>
    %107 = arith.mulf %106, %105 : vector<8x128xf32>
    %108 = arith.subf %87, %107 : vector<8x128xf32>
    %109 = arith.mulf %83, %105 : vector<8x128xf32>
    %110 = arith.addf %109, %108 : vector<8x128xf32>
    %cst_54 = arith.constant 0.000000e+00 : f32
    %111 = vector.broadcast %cst_54 : f32 to vector<8x128xf32>
    %112 = arith.subf %111, %110 : vector<8x128xf32>
    %113 = math.exp %112 : vector<8x128xf32>
    %cst_55 = arith.constant 1.000000e+00 : f32
    %114 = vector.broadcast %cst_55 : f32 to vector<8x128xf32>
    %115 = arith.addf %114, %113 : vector<8x128xf32>
    %116 = tpu.reciprocal %115 {approx = true} : vector<8x128xf32> -> vector<8x128xf32>
    %117 = arith.mulf %115, %116 : vector<8x128xf32>
    %cst_56 = arith.constant 2.000000e+00 : f32
    %118 = vector.broadcast %cst_56 : f32 to vector<8x128xf32>
    %119 = arith.subf %118, %117 : vector<8x128xf32>
    %120 = arith.mulf %116, %119 : vector<8x128xf32>
    %c0_57 = arith.constant 0 : index
    %c512 = arith.constant 512 : index
    %121 = vector.load %arg4[%c0_57, %c512] : memref<128x768xbf16, #tpu.memory_space<vmem>>, vector<128x128xbf16>
    %122 = arith.truncf %120 : vector<8x128xf32> to vector<8x128xbf16>
    %cst_58 = arith.constant dense<0.000000e+00> : vector<8x128xf32>
    %123 = tpu.matmul %122, %121, %cst_58 {dimension_numbers = #tpu.dot_dimension_numbers<[1], [0], [0], [1], [0, 0, 1, 1], [], []>} : vector<8x128xbf16>, vector<128x128xbf16>, vector<8x128xf32> -> vector<8x128xf32>
    %c7 = arith.constant 7 : index
    %c0_59 = arith.constant 0 : index
    %c0_60 = arith.constant 0 : index
    %124 = vector.load %arg5[%c7, %c0_59, %c0_60] : memref<9x8x128xf32, #tpu.memory_space<vmem>>, vector<1x8x128xf32>
    %125 = vector.shape_cast %124 : vector<1x8x128xf32> to vector<8x128xf32>
    %126 = arith.addf %123, %125 : vector<8x128xf32>
    %cst_61 = arith.constant 0.000000e+00 : f32
    %127 = vector.broadcast %cst_61 : f32 to vector<8x128xf32>
    %128 = arith.subf %127, %126 : vector<8x128xf32>
    %129 = math.exp %128 : vector<8x128xf32>
    %cst_62 = arith.constant 1.000000e+00 : f32
    %130 = vector.broadcast %cst_62 : f32 to vector<8x128xf32>
    %131 = arith.addf %130, %129 : vector<8x128xf32>
    %132 = tpu.reciprocal %131 {approx = true} : vector<8x128xf32> -> vector<8x128xf32>
    %133 = arith.mulf %131, %132 : vector<8x128xf32>
    %cst_63 = arith.constant 2.000000e+00 : f32
    %134 = vector.broadcast %cst_63 : f32 to vector<8x128xf32>
    %135 = arith.subf %134, %133 : vector<8x128xf32>
    %136 = arith.mulf %132, %135 : vector<8x128xf32>
    %c0_64 = arith.constant 0 : index
    %c640 = arith.constant 640 : index
    %137 = vector.load %arg4[%c0_64, %c640] : memref<128x768xbf16, #tpu.memory_space<vmem>>, vector<128x128xbf16>
    %138 = arith.truncf %136 : vector<8x128xf32> to vector<8x128xbf16>
    %cst_65 = arith.constant dense<0.000000e+00> : vector<8x128xf32>
    %139 = tpu.matmul %138, %137, %cst_65 {dimension_numbers = #tpu.dot_dimension_numbers<[1], [0], [0], [1], [0, 0, 1, 1], [], []>} : vector<8x128xbf16>, vector<128x128xbf16>, vector<8x128xf32> -> vector<8x128xf32>
    %c8 = arith.constant 8 : index
    %c0_66 = arith.constant 0 : index
    %c0_67 = arith.constant 0 : index
    %140 = vector.load %arg5[%c8, %c0_66, %c0_67] : memref<9x8x128xf32, #tpu.memory_space<vmem>>, vector<1x8x128xf32>
    %141 = vector.shape_cast %140 : vector<1x8x128xf32> to vector<8x128xf32>
    %142 = arith.addf %139, %141 : vector<8x128xf32>
    %cst_68 = arith.constant 0.000000e+00 : f32
    %143 = vector.broadcast %cst_68 : f32 to vector<8x128xf32>
    %144 = arith.subf %143, %142 : vector<8x128xf32>
    %145 = math.exp %144 : vector<8x128xf32>
    %cst_69 = arith.constant 1.000000e+00 : f32
    %146 = vector.broadcast %cst_69 : f32 to vector<8x128xf32>
    %147 = arith.addf %146, %145 : vector<8x128xf32>
    %148 = tpu.reciprocal %147 {approx = true} : vector<8x128xf32> -> vector<8x128xf32>
    %149 = arith.mulf %147, %148 : vector<8x128xf32>
    %cst_70 = arith.constant 2.000000e+00 : f32
    %150 = vector.broadcast %cst_70 : f32 to vector<8x128xf32>
    %151 = arith.subf %150, %149 : vector<8x128xf32>
    %152 = arith.mulf %148, %151 : vector<8x128xf32>
    %c0_71 = arith.constant 0 : index
    %c0_72 = arith.constant 0 : index
    %153 = vector.load %arg6[%c0_71, %c0_72] : memref<8x384xf32, #tpu.memory_space<vmem>>, vector<8x128xf32>
    tpu.vector_store %arg6[%c0_71, %c0_72], %152 {strides = array<i32>} : memref<8x384xf32, #tpu.memory_space<vmem>>, vector<8x128xf32>,
    %c0_73 = arith.constant 0 : index
    %c128_74 = arith.constant 128 : index
    %154 = vector.load %arg6[%c0_73, %c128_74] : memref<8x384xf32, #tpu.memory_space<vmem>>, vector<8x128xf32>
    tpu.vector_store %arg6[%c0_73, %c128_74], %65 {strides = array<i32>} : memref<8x384xf32, #tpu.memory_space<vmem>>, vector<8x128xf32>,
    %c0_75 = arith.constant 0 : index
    %c256_76 = arith.constant 256 : index
    %155 = vector.load %arg6[%c0_75, %c256_76] : memref<8x384xf32, #tpu.memory_space<vmem>>, vector<8x128xf32>
    tpu.vector_store %arg6[%c0_75, %c256_76], %71 {strides = array<i32>} : memref<8x384xf32, #tpu.memory_space<vmem>>, vector<8x128xf32>,
    return
  }
}

</mosaic_0001>

<llo_original>
// kernel: tpu_custom_call.1
$region0: #{tpu_custom_call.1}
  #allocation0 [shape = 'u32[]', space=smem, size = 0x4, offset = 0x4, fixed_abs, tag = 'smem constant byte address 0x4 - core index']
  #allocation1 [shape = 'u32[144,128]{1,0:T(1,128)}', space=vmem, size = 0x12000, scoped, tag = 'internal scratch']
  %s0 = inlined_call_operand.hbm [shape: f32[8,16], index: 0, kind: input, shape index: {}]
  %s1 = inlined_call_operand.hbm [shape: f32[8,8], index: 1, kind: input, shape index: {}]
  %s2 = inlined_call_operand.hbm [shape: f32[8,128], index: 2, kind: input, shape index: {}]
  %s3 = inlined_call_operand.hbm [shape: f32[32,128], index: 3, kind: input, shape index: {}]
  %s4 = inlined_call_operand.hbm [shape: bf16[128,768], index: 4, kind: input, shape index: {}]
  %s5 = inlined_call_operand.hbm [shape: f32[9,8,128], index: 5, kind: input, shape index: {}]
  %s6 = inlined_call_operand.hbm [shape: f32[8,384], index: 6, kind: output, shape index: {}]
  %s7 = sld [smem:[#allocation0]]
  $region58: #{tpu_custom_call.1} parent=0
    _
  %s9 = ssub.s32 1, %s7
  %s10 = scalar_select 0, %s9, %s7
  $region1: #{tpu_custom_call.1} parent=0
    #allocation2 [shape = 'u8[4096]{0}', space=vmem, size = 0x1000, scoped, tag = 'input window, operand 0, single buffered']
    #allocation3 [shape = 's32[1]{0}', space=sflag, size = 0x4, scoped, tag = 'scoped memory for tpu_custom_call.1']
    #allocation4 [shape = 's32[1]{0}', space=sflag, size = 0x4, scoped, tag = 'scoped memory for tpu_custom_call.1']
    #allocation5 [shape = 'u8[4096]{0}', space=vmem, size = 0x1000, scoped, tag = 'input window, operand 1, single buffered']
    #allocation6 [shape = 's32[1]{0}', space=sflag, size = 0x4, scoped, tag = 'scoped memory for tpu_custom_call.1']
    #allocation7 [shape = 'u8[4096]{0}', space=vmem, size = 0x1000, scoped, tag = 'input window, operand 2, single buffered']
    #allocation8 [shape = 'u8[16384]{0}', space=vmem, size = 0x4000, scoped, tag = 'input window, operand 3, single buffered']
    #allocation9 [shape = 's32[1]{0}', space=sflag, size = 0x4, scoped, tag = 'scoped memory for tpu_custom_call.1']
    #allocation10 [shape = 'u8[196608]{0}', space=vmem, size = 0x30000, scoped, tag = 'input window, operand 4, single buffered']
    #allocation11 [shape = 'u8[36864]{0}', space=vmem, size = 0x9000, scoped, tag = 'input window, operand 5, single buffered']
    #allocation12 [shape = 's32[1]{0}', space=sflag, size = 0x4, scoped, tag = 'scoped memory for tpu_custom_call.1']
    #allocation13 [shape = 'u8[12288]{0}', space=vmem, size = 0x3000, scoped, tag = 'output window, operand 0, single buffered']
    %11 = vsyncpa [#allocation3], 0
    %12 = vsyncpa [#allocation6], 0
    %13 = vsyncpa [#allocation9], 0
    %14 = vsyncpa [#allocation12], 0
    %15 = vsyncpa [#allocation4], 0
    // Predicated region
    $region2: #{tpu_custom_call.1} parent=1 // pred_check
      _
    $region3: #{tpu_custom_call.1} parent=1 // pred_check_branch
      %17 = sbr.rel (0) target = $region5
    $region4: #{tpu_custom_call.1} parent=1 // pred_region
      %s19 = ssub.s32 128, 128
      %20 = vsyncadd [#allocation3], %s19
      %s22 = sshll.u32 [#allocation2], 4
      %s23 = int_to_ptr.vmem [resolvable:$true] %s22
      %25 = dma.hbm_to_vmem [thread:$0]  %s0, 128, %s23, [#allocation3]
    $region5: #{tpu_custom_call.1} parent=1 // pred_fallthru
      _
    // Predicated region
    $region6: #{tpu_custom_call.1} parent=1 // pred_check
      _
    $region7: #{tpu_custom_call.1} parent=1 // pred_check_branch
      %27 = sbr.rel (0) target = $region9
    $region8: #{tpu_custom_call.1} parent=1 // pred_region
      %s29 = ssub.s32 128, 128
      %30 = vsyncadd [#allocation6], %s29
      %s32 = sshll.u32 [#allocation5], 4
      %s33 = int_to_ptr.vmem [resolvable:$true] %s32
      %35 = dma.hbm_to_vmem [thread:$0]  %s1, 128, %s33, [#allocation6]
    $region9: #{tpu_custom_call.1} parent=1 // pred_fallthru
      _
    // Predicated region
    $region10: #{tpu_custom_call.1} parent=1 // pred_check
      _
    $region11: #{tpu_custom_call.1} parent=1 // pred_check_branch
      %37 = sbr.rel (0) target = $region13
    $region12: #{tpu_custom_call.1} parent=1 // pred_region
      %s39 = ssub.s32 128, 128
      %40 = vsyncadd [#allocation6], %s39
      %s42 = sshll.u32 [#allocation7], 4
      %s43 = int_to_ptr.vmem [resolvable:$true] %s42
      %45 = dma.hbm_to_vmem [thread:$0]  %s2, 128, %s43, [#allocation6]
    $region13: #{tpu_custom_call.1} parent=1 // pred_fallthru
      _
    // Predicated region
    $region14: #{tpu_custom_call.1} parent=1 // pred_check
      _
    $region15: #{tpu_custom_call.1} parent=1 // pred_check_branch
      %47 = sbr.rel (0) target = $region17
    $region16: #{tpu_custom_call.1} parent=1 // pred_region
      %s49 = ssub.s32 512, 512
      %50 = vsyncadd [#allocation9], %s49
      %s51 = sshll.u32 [#allocation8], 4
      %s52 = int_to_ptr.vmem [resolvable:$true] %s51
      %57 = dma.hbm_to_vmem [thread:$0]  %s3, 512, %s52, [#allocation9], 128, 128, 8
    $region17: #{tpu_custom_call.1} parent=1 // pred_fallthru
      _
    // Predicated region
    $region18: #{tpu_custom_call.1} parent=1 // pred_check
      _
    $region19: #{tpu_custom_call.1} parent=1 // pred_check_branch
      %59 = sbr.rel (0) target = $region21
    $region20: #{tpu_custom_call.1} parent=1 // pred_region
      %s61 = ssub.s32 6144, 6144
      %62 = vsyncadd [#allocation9], %s61
      %s63 = sshll.u32 [#allocation10], 4
      %s64 = int_to_ptr.vmem [resolvable:$true] %s63
      %69 = dma.hbm_to_vmem [thread:$0]  %s4, 6144, %s64, [#allocation9], 384, 384, 24
    $region21: #{tpu_custom_call.1} parent=1 // pred_fallthru
      _
    // Predicated region
    $region22: #{tpu_custom_call.1} parent=1 // pred_check
      _
    $region23: #{tpu_custom_call.1} parent=1 // pred_check_branch
      %71 = sbr.rel (0) target = $region25
    $region24: #{tpu_custom_call.1} parent=1 // pred_region
      %s73 = ssub.s32 1152, 1152
      %74 = vsyncadd [#allocation12], %s73
      %s75 = sshll.u32 [#allocation11], 4
      %s76 = int_to_ptr.vmem [resolvable:$true] %s75
      %81 = dma.hbm_to_vmem [thread:$0]  %s5, 1152, %s76, [#allocation12], 128, 128, 8
    $region25: #{tpu_custom_call.1} parent=1 // pred_fallthru
      _
    // Predicated region
    $region26: #{tpu_custom_call.1} parent=1 // pred_check
      _
    $region27: #{tpu_custom_call.1} parent=1 // pred_check_branch
      %83 = sbr.rel (0) target = $region29
    $region28: #{tpu_custom_call.1} parent=1 // pred_region
      %84 = dma.done [#allocation3], 128
    $region29: #{tpu_custom_call.1} parent=1 // pred_fallthru
      _
    // Predicated region
    $region30: #{tpu_custom_call.1} parent=1 // pred_check
      _
    $region31: #{tpu_custom_call.1} parent=1 // pred_check_branch
      %86 = sbr.rel (0) target = $region33
    $region32: #{tpu_custom_call.1} parent=1 // pred_region
      %87 = dma.done [#allocation6], 128
    $region33: #{tpu_custom_call.1} parent=1 // pred_fallthru
      _
    // Predicated region
    $region34: #{tpu_custom_call.1} parent=1 // pred_check
      _
    $region35: #{tpu_custom_call.1} parent=1 // pred_check_branch
      %89 = sbr.rel (0) target = $region37
    $region36: #{tpu_custom_call.1} parent=1 // pred_region
      %90 = dma.done [#allocation6], 128
    $region37: #{tpu_custom_call.1} parent=1 // pred_fallthru
      _
    // Predicated region
    $region38: #{tpu_custom_call.1} parent=1 // pred_check
      _
    $region39: #{tpu_custom_call.1} parent=1 // pred_check_branch
      %92 = sbr.rel (0) target = $region41
    $region40: #{tpu_custom_call.1} parent=1 // pred_region
      %93 = dma.done [#allocation9], 512
    $region41: #{tpu_custom_call.1} parent=1 // pred_fallthru
      _
    // Predicated region
    $region42: #{tpu_custom_call.1} parent=1 // pred_check
      _
    $region43: #{tpu_custom_call.1} parent=1 // pred_check_branch
      %95 = sbr.rel (0) target = $region45
    $region44: #{tpu_custom_call.1} parent=1 // pred_region
      %96 = dma.done [#allocation9], 6144
    $region45: #{tpu_custom_call.1} parent=1 // pred_fallthru
      _
    // Predicated region
    $region46: #{tpu_custom_call.1} parent=1 // pred_check
      _
    $region47: #{tpu_custom_call.1} parent=1 // pred_check_branch
      %98 = sbr.rel (0) target = $region49
    $region48: #{tpu_custom_call.1} parent=1 // pred_region
      %99 = dma.done [#allocation12], 1152
    $region49: #{tpu_custom_call.1} parent=1 // pred_fallthru
      _
    %v101 = vld [vmem:[#allocation2] sm:$0xff]
    %v102 = vld [vmem:[#allocation5] sm:$0xff]
    %v103 = vld [vmem:[#allocation8] sm:$0xff]
    %v104 = vld [vmem:[#allocation8 + $0x8] sm:$0xff]
    %v105 = vld [vmem:[#allocation8 + $0x10] sm:$0xff]
    %vm106 = vcmask 64512
    %v108 = vsel %vm106, %v102, 0
    %110 = vmatprep.subr.mxu0 0.0
    %111 = vmatpush1.msra.mxu0 %v105
    %112 = vmatprep.subr.mxu0 0.0
    %113 = vmatpush1.msra.mxu0 0.0
    %114 = vmatprep.subr.mxu0 0.0
    %115 = vmatpush1.msra.mxu0 0.0
    %116 = vmatprep.subr.mxu0 0.0
    %117 = vmatpush1.msra.mxu0 0.0
    %118 = vmatprep.subr.mxu0 0.0
    %119 = vmatpush1.msra.mxu0 0.0
    %120 = vmatprep.subr.mxu0 0.0
    %121 = vmatpush1.msra.mxu0 0.0
    %122 = vmatprep.subr.mxu0 0.0
    %123 = vmatpush1.msra.mxu0 0.0
    %124 = vmatprep.subr.mxu0 0.0
    %125 = vmatpush1.msra.mxu0 0.0
    %126 = vmatprep.subr.mxu0 0.0
    %127 = vmatpush1.msra.mxu0 0.0
    %128 = vmatprep.subr.mxu0 0.0
    %129 = vmatpush1.msra.mxu0 0.0
    %130 = vmatprep.subr.mxu0 0.0
    %131 = vmatpush1.msra.mxu0 0.0
    %132 = vmatprep.subr.mxu0 0.0
    %133 = vmatpush1.msra.mxu0 0.0
    %134 = vmatprep.subr.mxu0 0.0
    %135 = vmatpush1.msra.mxu0 0.0
    %136 = vmatprep.subr.mxu0 0.0
    %137 = vmatpush1.msra.mxu0 0.0
    %138 = vmatprep.subr.mxu0 0.0
    %139 = vmatpush1.msra.mxu0 0.0
    %140 = vmatprep.subr.mxu0 0.0
    %141 = vmatpush1.msra.mxu0 0.0
    %142 = vmatprep.subr.mxu0 0.0
    %143 = vmatpush1.msra.mxu0 0.0
    %144 = vmatprep.subr.mxu0 0.0
    %145 = vmatpush1.msra.mxu0 0.0
    %146 = vmatprep.subr.mxu0 0.0
    %147 = vmatpush1.msra.mxu0 0.0
    %148 = vmatprep.subr.mxu0 0.0
    %149 = vmatpush1.msra.mxu0 0.0
    %150 = vmatprep.subr.mxu0 0.0
    %151 = vmatpush1.msra.mxu0 0.0
    %152 = vmatprep.subr.mxu0 0.0
    %153 = vmatpush1.msra.mxu0 0.0
    %154 = vmatprep.subr.mxu0 0.0
    %155 = vmatpush1.msra.mxu0 0.0
    %156 = vmatprep.subr.mxu0 0.0
    %157 = vmatpush1.msra.mxu0 0.0
    %158 = vmatprep.subr.mxu0 0.0
    %159 = vmatpush1.msra.mxu0 0.0
    %160 = vmatprep.subr.mxu0 0.0
    %161 = vmatpush1.msra.mxu0 0.0
    %162 = vmatprep.subr.mxu0 0.0
    %163 = vmatpush1.msra.mxu0 0.0
    %164 = vmatprep.subr.mxu0 0.0
    %165 = vmatpush1.msra.mxu0 0.0
    %166 = vmatprep.subr.mxu0 0.0
    %167 = vmatpush1.msra.mxu0 0.0
    %168 = vmatprep.subr.mxu0 0.0
    %169 = vmatpush1.msra.mxu0 0.0
    %170 = vmatprep.subr.mxu0 0.0
    %171 = vmatpush1.msra.mxu0 0.0
    %172 = vmatprep.subr.mxu0 0.0
    %173 = vmatpush1.msra.mxu0 0.0
    %174 = vmatprep.mubr.f32.mxu0 0.0
    %175 = vmatmul.mubr.f32.gmra.mrb[0].mxu0 %v108
    %v176 = vpop.f32.mrb[0].mxu0
    %v177 = vadd.f32 0.0, %v176
    %v178 = vpop.f32.mrb[0].mxu0
    %179 = vdwg.mxu0
    %vm180 = vcmask 130048
    %v182 = vsel %vm180, %v101, 0
    %184 = vmatprep.subr.mxu0 0.0
    %185 = vmatpush1.msra.mxu0 %v103
    %186 = vmatprep.subr.mxu0 0.0
    %187 = vmatpush1.msra.mxu0 %v104
    %188 = vmatprep.subr.mxu0 0.0
    %189 = vmatpush1.msra.mxu0 0.0
    %190 = vmatprep.subr.mxu0 0.0
    %191 = vmatpush1.msra.mxu0 0.0
    %192 = vmatprep.subr.mxu0 0.0
    %193 = vmatpush1.msra.mxu0 0.0
    %194 = vmatprep.subr.mxu0 0.0
    %195 = vmatpush1.msra.mxu0 0.0
    %196 = vmatprep.subr.mxu0 0.0
    %197 = vmatpush1.msra.mxu0 0.0
    %198 = vmatprep.subr.mxu0 0.0
    %199 = vmatpush1.msra.mxu0 0.0
    %200 = vmatprep.subr.mxu0 0.0
    %201 = vmatpush1.msra.mxu0 0.0
    %202 = vmatprep.subr.mxu0 0.0
    %203 = vmatpush1.msra.mxu0 0.0
    %204 = vmatprep.subr.mxu0 0.0
    %205 = vmatpush1.msra.mxu0 0.0
    %206 = vmatprep.subr.mxu0 0.0
    %207 = vmatpush1.msra.mxu0 0.0
    %208 = vmatprep.subr.mxu0 0.0
    %209 = vmatpush1.msra.mxu0 0.0
    %210 = vmatprep.subr.mxu0 0.0
    %211 = vmatpush1.msra.mxu0 0.0
    %212 = vmatprep.subr.mxu0 0.0
    %213 = vmatpush1.msra.mxu0 0.0
    %214 = vmatprep.subr.mxu0 0.0
    %215 = vmatpush1.msra.mxu0 0.0
    %216 = vmatprep.subr.mxu0 0.0
    %217 = vmatpush1.msra.mxu0 0.0
    %218 = vmatprep.subr.mxu0 0.0
    %219 = vmatpush1.msra.mxu0 0.0
    %220 = vmatprep.subr.mxu0 0.0
    %221 = vmatpush1.msra.mxu0 0.0
    %222 = vmatprep.subr.mxu0 0.0
    %223 = vmatpush1.msra.mxu0 0.0
    %224 = vmatprep.subr.mxu0 0.0
    %225 = vmatpush1.msra.mxu0 0.0
    %226 = vmatprep.subr.mxu0 0.0
    %227 = vmatpush1.msra.mxu0 0.0
    %228 = vmatprep.subr.mxu0 0.0
    %229 = vmatpush1.msra.mxu0 0.0
    %230 = vmatprep.subr.mxu0 0.0
    %231 = vmatpush1.msra.mxu0 0.0
    %232 = vmatprep.subr.mxu0 0.0
    %233 = vmatpush1.msra.mxu0 0.0
    %234 = vmatprep.subr.mxu0 0.0
    %235 = vmatpush1.msra.mxu0 0.0
    %236 = vmatprep.subr.mxu0 0.0
    %237 = vmatpush1.msra.mxu0 0.0
    %238 = vmatprep.subr.mxu0 0.0
    %239 = vmatpush1.msra.mxu0 0.0
    %240 = vmatprep.subr.mxu0 0.0
    %241 = vmatpush1.msra.mxu0 0.0
    %242 = vmatprep.subr.mxu0 0.0
    %243 = vmatpush1.msra.mxu0 0.0
    %244 = vmatprep.subr.mxu0 0.0
    %245 = vmatpush1.msra.mxu0 0.0
    %246 = vmatprep.subr.mxu0 0.0
    %247 = vmatpush1.msra.mxu0 0.0
    %248 = vmatprep.mubr.f32.mxu0 0.0
    %249 = vmatmul.mubr.f32.gmra.mrb[0].mxu0 %v182
    %v250 = vpop.f32.mrb[0].mxu0
    %v251 = vadd.f32 %v177, %v250
    %v252 = vpop.f32.mrb[0].mxu0
    %253 = vdwg.mxu0
    %v254 = vld [vmem:[#allocation11] sm:$0xff]
    %s255 = scalar_lea.vmem [#allocation11], 8
    %v256 = vld [vmem:[%s255] sm:$0xff]
    %v257 = vrot.slane %v251, 4
    %v258 = vadd.f32 %v251, %v257
    %v259 = vrot.slane %v258, 2
    %v260 = vadd.f32 %v258, %v259
    %v261 = vrot.slane %v260, 1
    %v262 = vadd.f32 %v260, %v261
    %v263 = vrcp.pop 8.0
    %v264 = vmul.f32 %v262, %v263
    %v265 = vmul.f32 %v251, %v251
    %v266 = vrot.slane %v265, 4
    %v267 = vadd.f32 %v265, %v266
    %v268 = vrot.slane %v267, 2
    %v269 = vadd.f32 %v267, %v268
    %v270 = vrot.slane %v269, 1
    %v271 = vadd.f32 %v269, %v270
    %v272 = vmul.f32 %v271, %v263
    %v273 = vmul.f32 %v264, %v264
    %v274 = vsub.f32 %v272, %v273
    %v275 = vmax.f32 %v274, 0.0
    %v276 = vadd.f32 %v275, 1e-05
    %v277 = vrsqrt.pop %v276
    %v278 = vmul.f32 %v254, %v277
    %v279 = vmul.f32 %v264, %v278
    %v280 = vsub.f32 %v256, %v279
    %v281 = vmul.f32 %v251, %v278
    %v282 = vadd.f32 %v281, %v280
    %v283 = vsub.f32 0.0, %v282
    %v284 = vmul.f32 %v283, 1.442695
    %v285 = vpow.pop %v284
    %v286 = vadd.f32 %v285, 1.0
    %v287 = vrcp.pop %v286
    %v288 = vmul.f32 %v286, %v287
    %v289 = vsub.f32 2.0, %v288
    %v290 = vmul.f32 %v287, %v289
    %v291 = vld [vmem:[#allocation10] sm:$0xf]
    %v292 = vld [vmem:[#allocation10 + $0x18] sm:$0xf]
    %v293 = vld [vmem:[#allocation10 + $0x30] sm:$0xf]
    %v294 = vld [vmem:[#allocation10 + $0x48] sm:$0xf]
    %v295 = vld [vmem:[#allocation10 + $0x60] sm:$0xf]
    %v296 = vld [vmem:[#allocation10 + $0x78] sm:$0xf]
    %v297 = vld [vmem:[#allocation10 + $0x90] sm:$0xf]
    %v298 = vld [vmem:[#allocation10 + $0xa8] sm:$0xf]
    %v299 = vld [vmem:[#allocation10 + $0xc0] sm:$0xf]
    %v300 = vld [vmem:[#allocation10 + $0xd8] sm:$0xf]
    %v301 = vld [vmem:[#allocation10 + $0xf0] sm:$0xf]
    %v302 = vld [vmem:[#allocation10 + $0x108] sm:$0xf]
    %v303 = vld [vmem:[#allocation10 + $0x120] sm:$0xf]
    %v304 = vld [vmem:[#allocation10 + $0x138] sm:$0xf]
    %v305 = vld [vmem:[#allocation10 + $0x150] sm:$0xf]
    %v306 = vld [vmem:[#allocation10 + $0x168] sm:$0xf]
    %v307 = vpack.c.bf16 %v290, %v290
    %s308 = scalar_lea.vmem [#allocation11], 16
    %v309 = vld [vmem:[%s308] sm:$0xff]
    %v326 = vunpack.c.l.b16 %v291
    %v327 = vunpack.c.l.b16 %v292
    %v328 = vunpack.c.l.b16 %v293
    %v329 = vunpack.c.l.b16 %v294
    %v330 = vunpack.c.l.b16 %v295
    %v331 = vunpack.c.l.b16 %v296
    %v332 = vunpack.c.l.b16 %v297
    %v333 = vunpack.c.l.b16 %v298
    %v334 = vunpack.c.l.b16 %v299
    %v335 = vunpack.c.l.b16 %v300
    %v336 = vunpack.c.l.b16 %v301
    %v337 = vunpack.c.l.b16 %v302
    %v338 = vunpack.c.l.b16 %v303
    %v339 = vunpack.c.l.b16 %v304
    %v340 = vunpack.c.l.b16 %v305
    %v341 = vunpack.c.l.b16 %v306
    %v342 = vpack.c.b16 %v327, %v326
    %v343 = vpack.c.b16 %v329, %v328
    %v344 = vpack.c.b16 %v331, %v330
    %v345 = vpack.c.b16 %v333, %v332
    %v346 = vpack.c.b16 %v335, %v334
    %v347 = vpack.c.b16 %v337, %v336
    %v348 = vpack.c.b16 %v339, %v338
    %v349 = vpack.c.b16 %v341, %v340
    %358 = vmatprep.subr.bf16.mxu0 0
    %359 = vmatpush1.bf16.msra.mxu0 %v342
    %360 = vmatprep.subr.bf16.mxu0 0
    %361 = vmatpush1.bf16.msra.mxu0 %v343
    %362 = vmatprep.subr.bf16.mxu0 0
    %363 = vmatpush1.bf16.msra.mxu0 %v344
    %364 = vmatprep.subr.bf16.mxu0 0
    %365 = vmatpush1.bf16.msra.mxu0 %v345
    %366 = vmatprep.subr.bf16.mxu0 0
    %367 = vmatpush1.bf16.msra.mxu0 %v346
    %368 = vmatprep.subr.bf16.mxu0 0
    %369 = vmatpush1.bf16.msra.mxu0 %v347
    %370 = vmatprep.subr.bf16.mxu0 0
    %371 = vmatpush1.bf16.msra.mxu0 %v348
    %372 = vmatprep.subr.bf16.mxu0 0
    %373 = vmatpush1.bf16.msra.mxu0 %v349
    %374 = vmatprep.subr.bf16.mxu0 0
    %375 = vmatpush1.bf16.msra.mxu0 0
    %376 = vmatprep.subr.bf16.mxu0 0
    %377 = vmatpush1.bf16.msra.mxu0 0
    %378 = vmatprep.subr.bf16.mxu0 0
    %379 = vmatpush1.bf16.msra.mxu0 0
    %380 = vmatprep.subr.bf16.mxu0 0
    %381 = vmatpush1.bf16.msra.mxu0 0
    %382 = vmatprep.subr.bf16.mxu0 0
    %383 = vmatpush1.bf16.msra.mxu0 0
    %384 = vmatprep.subr.bf16.mxu0 0
    %385 = vmatpush1.bf16.msra.mxu0 0
    %386 = vmatprep.subr.bf16.mxu0 0
    %387 = vmatpush1.bf16.msra.mxu0 0
    %388 = vmatprep.subr.bf16.mxu0 0
    %389 = vmatpush1.bf16.msra.mxu0 0
    %390 = vmatprep.mubr.bf16.mxu0 0
    %391 = vmatmul.mubr.bf16.gmra.mrb[0].mxu0 %v307
    %v392 = vpop.f32.mrb[0].mxu0
    %v393 = vadd.f32 %v309, %v392
    %v394 = vpop.f32.mrb[0].mxu0
    %v395 = vpop.f32.mrb[0].mxu0
    %v396 = vpop.f32.mrb[0].mxu0
    %397 = vdwg.mxu0
    %v398 = vsub.f32 0.0, %v393
    %v399 = vmul.f32 %v398, 1.442695
    %v400 = vpow.pop %v399
    %v401 = vadd.f32 %v400, 1.0
    %v402 = vrcp.pop %v401
    %v403 = vmul.f32 %v401, %v402
    %v404 = vsub.f32 2.0, %v403
    %v405 = vmul.f32 %v402, %v404
    %v406 = vld [vmem:[#allocation10 + $0x4] sm:$0xf]
    %v407 = vld [vmem:[#allocation10 + $0x1c] sm:$0xf]
    %v408 = vld [vmem:[#allocation10 + $0x34] sm:$0xf]
    %v409 = vld [vmem:[#allocation10 + $0x4c] sm:$0xf]
    %v410 = vld [vmem:[#allocation10 + $0x64] sm:$0xf]
    %v411 = vld [vmem:[#allocation10 + $0x7c] sm:$0xf]
    %v412 = vld [vmem:[#allocation10 + $0x94] sm:$0xf]
    %v413 = vld [vmem:[#allocation10 + $0xac] sm:$0xf]
    %v414 = vld [vmem:[#allocation10 + $0xc4] sm:$0xf]
    %v415 = vld [vmem:[#allocation10 + $0xdc] sm:$0xf]
    %v416 = vld [vmem:[#allocation10 + $0xf4] sm:$0xf]
    %v417 = vld [vmem:[#allocation10 + $0x10c] sm:$0xf]
    %v418 = vld [vmem:[#allocation10 + $0x124] sm:$0xf]
    %v419 = vld [vmem:[#allocation10 + $0x13c] sm:$0xf]
    %v420 = vld [vmem:[#allocation10 + $0x154] sm:$0xf]
    %v421 = vld [vmem:[#allocation10 + $0x16c] sm:$0xf]
    %v422 = vpack.c.bf16 %v405, %v405
    %s423 = scalar_lea.vmem [#allocation11], 24
    %v424 = vld [vmem:[%s423] sm:$0xff]
    %v441 = vunpack.c.l.b16 %v406
    %v442 = vunpack.c.l.b16 %v407
    %v443 = vunpack.c.l.b16 %v408
    %v444 = vunpack.c.l.b16 %v409
    %v445 = vunpack.c.l.b16 %v410
    %v446 = vunpack.c.l.b16 %v411
    %v447 = vunpack.c.l.b16 %v412
    %v448 = vunpack.c.l.b16 %v413
    %v449 = vunpack.c.l.b16 %v414
    %v450 = vunpack.c.l.b16 %v415
    %v451 = vunpack.c.l.b16 %v416
    %v452 = vunpack.c.l.b16 %v417
    %v453 = vunpack.c.l.b16 %v418
    %v454 = vunpack.c.l.b16 %v419
    %v455 = vunpack.c.l.b16 %v420
    %v456 = vunpack.c.l.b16 %v421
    %v457 = vpack.c.b16 %v442, %v441
    %v458 = vpack.c.b16 %v444, %v443
    %v459 = vpack.c.b16 %v446, %v445
    %v460 = vpack.c.b16 %v448, %v447
    %v461 = vpack.c.b16 %v450, %v449
    %v462 = vpack.c.b16 %v452, %v451
    %v463 = vpack.c.b16 %v454, %v453
    %v464 = vpack.c.b16 %v456, %v455
    %473 = vmatprep.subr.bf16.mxu0 0
    %474 = vmatpush1.bf16.msra.mxu0 %v457
    %475 = vmatprep.subr.bf16.mxu0 0
    %476 = vmatpush1.bf16.msra.mxu0 %v458
    %477 = vmatprep.subr.bf16.mxu0 0
    %478 = vmatpush1.bf16.msra.mxu0 %v459
    %479 = vmatprep.subr.bf16.mxu0 0
    %480 = vmatpush1.bf16.msra.mxu0 %v460
    %481 = vmatprep.subr.bf16.mxu0 0
    %482 = vmatpush1.bf16.msra.mxu0 %v461
    %483 = vmatprep.subr.bf16.mxu0 0
    %484 = vmatpush1.bf16.msra.mxu0 %v462
    %485 = vmatprep.subr.bf16.mxu0 0
    %486 = vmatpush1.bf16.msra.mxu0 %v463
    %487 = vmatprep.subr.bf16.mxu0 0
    %488 = vmatpush1.bf16.msra.mxu0 %v464
    %489 = vmatprep.subr.bf16.mxu0 0
    %490 = vmatpush1.bf16.msra.mxu0 0
    %491 = vmatprep.subr.bf16.mxu0 0
    %492 = vmatpush1.bf16.msra.mxu0 0
    %493 = vmatprep.subr.bf16.mxu0 0
    %494 = vmatpush1.bf16.msra.mxu0 0
    %495 = vmatprep.subr.bf16.mxu0 0
    %496 = vmatpush1.bf16.msra.mxu0 0
    %497 = vmatprep.subr.bf16.mxu0 0
    %498 = vmatpush1.bf16.msra.mxu0 0
    %499 = vmatprep.subr.bf16.mxu0 0
    %500 = vmatpush1.bf16.msra.mxu0 0
    %501 = vmatprep.subr.bf16.mxu0 0
    %502 = vmatpush1.bf16.msra.mxu0 0
    %503 = vmatprep.subr.bf16.mxu0 0
    %504 = vmatpush1.bf16.msra.mxu0 0
    %505 = vmatprep.mubr.bf16.mxu0 0
    %506 = vmatmul.mubr.bf16.gmra.mrb[0].mxu0 %v422
    %v507 = vpop.f32.mrb[0].mxu0
    %v508 = vadd.f32 %v424, %v507
    %v509 = vpop.f32.mrb[0].mxu0
    %v510 = vpop.f32.mrb[0].mxu0
    %v511 = vpop.f32.mrb[0].mxu0
    %512 = vdwg.mxu0
    %v513 = vld [vmem:[#allocation10 + $0x8] sm:$0xf]
    %v514 = vld [vmem:[#allocation10 + $0x20] sm:$0xf]
    %v515 = vld [vmem:[#allocation10 + $0x38] sm:$0xf]
    %v516 = vld [vmem:[#allocation10 + $0x50] sm:$0xf]
    %v517 = vld [vmem:[#allocation10 + $0x68] sm:$0xf]
    %v518 = vld [vmem:[#allocation10 + $0x80] sm:$0xf]
    %v519 = vld [vmem:[#allocation10 + $0x98] sm:$0xf]
    %v520 = vld [vmem:[#allocation10 + $0xb0] sm:$0xf]
    %v521 = vld [vmem:[#allocation10 + $0xc8] sm:$0xf]
    %v522 = vld [vmem:[#allocation10 + $0xe0] sm:$0xf]
    %v523 = vld [vmem:[#allocation10 + $0xf8] sm:$0xf]
    %v524 = vld [vmem:[#allocation10 + $0x110] sm:$0xf]
    %v525 = vld [vmem:[#allocation10 + $0x128] sm:$0xf]
    %v526 = vld [vmem:[#allocation10 + $0x140] sm:$0xf]
    %v527 = vld [vmem:[#allocation10 + $0x158] sm:$0xf]
    %v528 = vld [vmem:[#allocation10 + $0x170] sm:$0xf]
    %s529 = scalar_lea.vmem [#allocation11], 32
    %v530 = vld [vmem:[%s529] sm:$0xff]
    %v547 = vunpack.c.l.b16 %v513
    %v548 = vunpack.c.l.b16 %v514
    %v549 = vunpack.c.l.b16 %v515
    %v550 = vunpack.c.l.b16 %v516
    %v551 = vunpack.c.l.b16 %v517
    %v552 = vunpack.c.l.b16 %v518
    %v553 = vunpack.c.l.b16 %v519
    %v554 = vunpack.c.l.b16 %v520
    %v555 = vunpack.c.l.b16 %v521
    %v556 = vunpack.c.l.b16 %v522
    %v557 = vunpack.c.l.b16 %v523
    %v558 = vunpack.c.l.b16 %v524
    %v559 = vunpack.c.l.b16 %v525
    %v560 = vunpack.c.l.b16 %v526
    %v561 = vunpack.c.l.b16 %v527
    %v562 = vunpack.c.l.b16 %v528
    %v563 = vpack.c.b16 %v548, %v547
    %v564 = vpack.c.b16 %v550, %v549
    %v565 = vpack.c.b16 %v552, %v551
    %v566 = vpack.c.b16 %v554, %v553
    %v567 = vpack.c.b16 %v556, %v555
    %v568 = vpack.c.b16 %v558, %v557
    %v569 = vpack.c.b16 %v560, %v559
    %v570 = vpack.c.b16 %v562, %v561
    %579 = vmatprep.subr.bf16.mxu0 0
    %580 = vmatpush1.bf16.msra.mxu0 %v563
    %581 = vmatprep.subr.bf16.mxu0 0
    %582 = vmatpush1.bf16.msra.mxu0 %v564
    %583 = vmatprep.subr.bf16.mxu0 0
    %584 = vmatpush1.bf16.msra.mxu0 %v565
    %585 = vmatprep.subr.bf16.mxu0 0
    %586 = vmatpush1.bf16.msra.mxu0 %v566
    %587 = vmatprep.subr.bf16.mxu0 0
    %588 = vmatpush1.bf16.msra.mxu0 %v567
    %589 = vmatprep.subr.bf16.mxu0 0
    %590 = vmatpush1.bf16.msra.mxu0 %v568
    %591 = vmatprep.subr.bf16.mxu0 0
    %592 = vmatpush1.bf16.msra.mxu0 %v569
    %593 = vmatprep.subr.bf16.mxu0 0
    %594 = vmatpush1.bf16.msra.mxu0 %v570
    %595 = vmatprep.subr.bf16.mxu0 0
    %596 = vmatpush1.bf16.msra.mxu0 0
    %597 = vmatprep.subr.bf16.mxu0 0
    %598 = vmatpush1.bf16.msra.mxu0 0
    %599 = vmatprep.subr.bf16.mxu0 0
    %600 = vmatpush1.bf16.msra.mxu0 0
    %601 = vmatprep.subr.bf16.mxu0 0
    %602 = vmatpush1.bf16.msra.mxu0 0
    %603 = vmatprep.subr.bf16.mxu0 0
    %604 = vmatpush1.bf16.msra.mxu0 0
    %605 = vmatprep.subr.bf16.mxu0 0
    %606 = vmatpush1.bf16.msra.mxu0 0
    %607 = vmatprep.subr.bf16.mxu0 0
    %608 = vmatpush1.bf16.msra.mxu0 0
    %609 = vmatprep.subr.bf16.mxu0 0
    %610 = vmatpush1.bf16.msra.mxu0 0
    %611 = vmatprep.mubr.bf16.mxu0 0
    %612 = vmatmul.mubr.bf16.gmra.mrb[0].mxu0 %v422
    %v613 = vpop.f32.mrb[0].mxu0
    %v614 = vadd.f32 %v530, %v613
    %v615 = vpop.f32.mrb[0].mxu0
    %v616 = vpop.f32.mrb[0].mxu0
    %v617 = vpop.f32.mrb[0].mxu0
    %618 = vdwg.mxu0
    %v619 = vmul.f32 %v614, 0.5
    %v620 = vmul.f32 %v619, 1.442695
    %v621 = vpow.pop %v620
    %v622 = vld [vmem:[#allocation7] sm:$0xff]
    %v623 = vmul.f32 %v621, %v622
    %v624 = vadd.f32 %v508, %v623
    %v625 = vld [vmem:[#allocation10 + $0xc] sm:$0xf]
    %v626 = vld [vmem:[#allocation10 + $0x24] sm:$0xf]
    %v627 = vld [vmem:[#allocation10 + $0x3c] sm:$0xf]
    %v628 = vld [vmem:[#allocation10 + $0x54] sm:$0xf]
    %v629 = vld [vmem:[#allocation10 + $0x6c] sm:$0xf]
    %v630 = vld [vmem:[#allocation10 + $0x84] sm:$0xf]
    %v631 = vld [vmem:[#allocation10 + $0x9c] sm:$0xf]
    %v632 = vld [vmem:[#allocation10 + $0xb4] sm:$0xf]
    %v633 = vld [vmem:[#allocation10 + $0xcc] sm:$0xf]
    %v634 = vld [vmem:[#allocation10 + $0xe4] sm:$0xf]
    %v635 = vld [vmem:[#allocation10 + $0xfc] sm:$0xf]
    %v636 = vld [vmem:[#allocation10 + $0x114] sm:$0xf]
    %v637 = vld [vmem:[#allocation10 + $0x12c] sm:$0xf]
    %v638 = vld [vmem:[#allocation10 + $0x144] sm:$0xf]
    %v639 = vld [vmem:[#allocation10 + $0x15c] sm:$0xf]
    %v640 = vld [vmem:[#allocation10 + $0x174] sm:$0xf]
    %v641 = vpack.c.bf16 %v624, %v624
    %v642 = vld [vmem:[#allocation8 + $0x18] sm:$0xff]
    %643 = vmatprep.subr.mxu0 0.0
    %644 = vmatpush1.msra.mxu0 %v642
    %645 = vmatprep.subr.mxu0 0.0
    %646 = vmatpush1.msra.mxu0 0.0
    %647 = vmatprep.subr.mxu0 0.0
    %648 = vmatpush1.msra.mxu0 0.0
    %649 = vmatprep.subr.mxu0 0.0
    %650 = vmatpush1.msra.mxu0 0.0
    %651 = vmatprep.subr.mxu0 0.0
    %652 = vmatpush1.msra.mxu0 0.0
    %653 = vmatprep.subr.mxu0 0.0
    %654 = vmatpush1.msra.mxu0 0.0
    %655 = vmatprep.subr.mxu0 0.0
    %656 = vmatpush1.msra.mxu0 0.0
    %657 = vmatprep.subr.mxu0 0.0
    %658 = vmatpush1.msra.mxu0 0.0
    %659 = vmatprep.subr.mxu0 0.0
    %660 = vmatpush1.msra.mxu0 0.0
    %661 = vmatprep.subr.mxu0 0.0
    %662 = vmatpush1.msra.mxu0 0.0
    %663 = vmatprep.subr.mxu0 0.0
    %664 = vmatpush1.msra.mxu0 0.0
    %665 = vmatprep.subr.mxu0 0.0
    %666 = vmatpush1.msra.mxu0 0.0
    %667 = vmatprep.subr.mxu0 0.0
    %668 = vmatpush1.msra.mxu0 0.0
    %669 = vmatprep.subr.mxu0 0.0
    %670 = vmatpush1.msra.mxu0 0.0
    %671 = vmatprep.subr.mxu0 0.0
    %672 = vmatpush1.msra.mxu0 0.0
    %673 = vmatprep.subr.mxu0 0.0
    %674 = vmatpush1.msra.mxu0 0.0
    %675 = vmatprep.subr.mxu0 0.0
    %676 = vmatpush1.msra.mxu0 0.0
    %677 = vmatprep.subr.mxu0 0.0
    %678 = vmatpush1.msra.mxu0 0.0
    %679 = vmatprep.subr.mxu0 0.0
    %680 = vmatpush1.msra.mxu0 0.0
    %681 = vmatprep.subr.mxu0 0.0
    %682 = vmatpush1.msra.mxu0 0.0
    %683 = vmatprep.subr.mxu0 0.0
    %684 = vmatpush1.msra.mxu0 0.0
    %685 = vmatprep.subr.mxu0 0.0
    %686 = vmatpush1.msra.mxu0 0.0
    %687 = vmatprep.subr.mxu0 0.0
    %688 = vmatpush1.msra.mxu0 0.0
    %689 = vmatprep.subr.mxu0 0.0
    %690 = vmatpush1.msra.mxu0 0.0
    %691 = vmatprep.subr.mxu0 0.0
    %692 = vmatpush1.msra.mxu0 0.0
    %693 = vmatprep.subr.mxu0 0.0
    %694 = vmatpush1.msra.mxu0 0.0
    %695 = vmatprep.subr.mxu0 0.0
    %696 = vmatpush1.msra.mxu0 0.0
    %697 = vmatprep.subr.mxu0 0.0
    %698 = vmatpush1.msra.mxu0 0.0
    %699 = vmatprep.subr.mxu0 0.0
    %700 = vmatpush1.msra.mxu0 0.0
    %701 = vmatprep.subr.mxu0 0.0
    %702 = vmatpush1.msra.mxu0 0.0
    %703 = vmatprep.subr.mxu0 0.0
    %704 = vmatpush1.msra.mxu0 0.0
    %705 = vmatprep.subr.mxu0 0.0
    %706 = vmatpush1.msra.mxu0 0.0
    %707 = vmatprep.mubr.f32.mxu0 0.0
    %708 = vmatmul.mubr.f32.gmra.mrb[0].mxu0 %v108
    %v709 = vpop.f32.mrb[0].mxu0
    %v710 = vadd.f32 0.0, %v709
    %v711 = vpop.f32.mrb[0].mxu0
    %712 = vdwg.mxu0
    %v729 = vunpack.c.l.b16 %v625
    %v730 = vunpack.c.l.b16 %v626
    %v731 = vunpack.c.l.b16 %v627
    %v732 = vunpack.c.l.b16 %v628
    %v733 = vunpack.c.l.b16 %v629
    %v734 = vunpack.c.l.b16 %v630
    %v735 = vunpack.c.l.b16 %v631
    %v736 = vunpack.c.l.b16 %v632
    %v737 = vunpack.c.l.b16 %v633
    %v738 = vunpack.c.l.b16 %v634
    %v739 = vunpack.c.l.b16 %v635
    %v740 = vunpack.c.l.b16 %v636
    %v741 = vunpack.c.l.b16 %v637
    %v742 = vunpack.c.l.b16 %v638
    %v743 = vunpack.c.l.b16 %v639
    %v744 = vunpack.c.l.b16 %v640
    %v745 = vpack.c.b16 %v730, %v729
    %v746 = vpack.c.b16 %v732, %v731
    %v747 = vpack.c.b16 %v734, %v733
    %v748 = vpack.c.b16 %v736, %v735
    %v749 = vpack.c.b16 %v738, %v737
    %v750 = vpack.c.b16 %v740, %v739
    %v751 = vpack.c.b16 %v742, %v741
    %v752 = vpack.c.b16 %v744, %v743
    %761 = vmatprep.subr.bf16.mxu0 0
    %762 = vmatpush1.bf16.msra.mxu0 %v745
    %763 = vmatprep.subr.bf16.mxu0 0
    %764 = vmatpush1.bf16.msra.mxu0 %v746
    %765 = vmatprep.subr.bf16.mxu0 0
    %766 = vmatpush1.bf16.msra.mxu0 %v747
    %767 = vmatprep.subr.bf16.mxu0 0
    %768 = vmatpush1.bf16.msra.mxu0 %v748
    %769 = vmatprep.subr.bf16.mxu0 0
    %770 = vmatpush1.bf16.msra.mxu0 %v749
    %771 = vmatprep.subr.bf16.mxu0 0
    %772 = vmatpush1.bf16.msra.mxu0 %v750
    %773 = vmatprep.subr.bf16.mxu0 0
    %774 = vmatpush1.bf16.msra.mxu0 %v751
    %775 = vmatprep.subr.bf16.mxu0 0
    %776 = vmatpush1.bf16.msra.mxu0 %v752
    %777 = vmatprep.subr.bf16.mxu0 0
    %778 = vmatpush1.bf16.msra.mxu0 0
    %779 = vmatprep.subr.bf16.mxu0 0
    %780 = vmatpush1.bf16.msra.mxu0 0
    %781 = vmatprep.subr.bf16.mxu0 0
    %782 = vmatpush1.bf16.msra.mxu0 0
    %783 = vmatprep.subr.bf16.mxu0 0
    %784 = vmatpush1.bf16.msra.mxu0 0
    %785 = vmatprep.subr.bf16.mxu0 0
    %786 = vmatpush1.bf16.msra.mxu0 0
    %787 = vmatprep.subr.bf16.mxu0 0
    %788 = vmatpush1.bf16.msra.mxu0 0
    %789 = vmatprep.subr.bf16.mxu0 0
    %790 = vmatpush1.bf16.msra.mxu0 0
    %791 = vmatprep.subr.bf16.mxu0 0
    %792 = vmatpush1.bf16.msra.mxu0 0
    %793 = vmatprep.mubr.bf16.mxu0 0
    %794 = vmatmul.mubr.bf16.gmra.mrb[0].mxu0 %v641
    %v795 = vpop.f32.mrb[0].mxu0
    %v796 = vadd.f32 %v710, %v795
    %v797 = vpop.f32.mrb[0].mxu0
    %v798 = vpop.f32.mrb[0].mxu0
    %v799 = vpop.f32.mrb[0].mxu0
    %800 = vdwg.mxu0
    %s801 = scalar_lea.vmem [#allocation11], 40
    %v802 = vld [vmem:[%s801] sm:$0xff]
    %s803 = scalar_lea.vmem [#allocation11], 48
    %v804 = vld [vmem:[%s803] sm:$0xff]
    %v805 = vrot.slane %v796, 4
    %v806 = vadd.f32 %v796, %v805
    %v807 = vrot.slane %v806, 2
    %v808 = vadd.f32 %v806, %v807
    %v809 = vrot.slane %v808, 1
    %v810 = vadd.f32 %v808, %v809
    %v811 = vmul.f32 %v810, %v263
    %v812 = vmul.f32 %v796, %v796
    %v813 = vrot.slane %v812, 4
    %v814 = vadd.f32 %v812, %v813
    %v815 = vrot.slane %v814, 2
    %v816 = vadd.f32 %v814, %v815
    %v817 = vrot.slane %v816, 1
    %v818 = vadd.f32 %v816, %v817
    %v819 = vmul.f32 %v818, %v263
    %v820 = vmul.f32 %v811, %v811
    %v821 = vsub.f32 %v819, %v820
    %v822 = vmax.f32 %v821, 0.0
    %v823 = vadd.f32 %v822, 1e-05
    %v824 = vrsqrt.pop %v823
    %v825 = vmul.f32 %v802, %v824
    %v826 = vmul.f32 %v811, %v825
    %v827 = vsub.f32 %v804, %v826
    %v828 = vmul.f32 %v796, %v825
    %v829 = vadd.f32 %v828, %v827
    %v830 = vsub.f32 0.0, %v829
    %v831 = vmul.f32 %v830, 1.442695
    %v832 = vpow.pop %v831
    %v833 = vadd.f32 %v832, 1.0
    %v834 = vrcp.pop %v833
    %v835 = vmul.f32 %v833, %v834
    %v836 = vsub.f32 2.0, %v835
    %v837 = vmul.f32 %v834, %v836
    %v838 = vld [vmem:[#allocation10 + $0x10] sm:$0xf]
    %v839 = vld [vmem:[#allocation10 + $0x28] sm:$0xf]
    %v840 = vld [vmem:[#allocation10 + $0x40] sm:$0xf]
    %v841 = vld [vmem:[#allocation10 + $0x58] sm:$0xf]
    %v842 = vld [vmem:[#allocation10 + $0x70] sm:$0xf]
    %v843 = vld [vmem:[#allocation10 + $0x88] sm:$0xf]
    %v844 = vld [vmem:[#allocation10 + $0xa0] sm:$0xf]
    %v845 = vld [vmem:[#allocation10 + $0xb8] sm:$0xf]
    %v846 = vld [vmem:[#allocation10 + $0xd0] sm:$0xf]
    %v847 = vld [vmem:[#allocation10 + $0xe8] sm:$0xf]
    %v848 = vld [vmem:[#allocation10 + $0x100] sm:$0xf]
    %v849 = vld [vmem:[#allocation10 + $0x118] sm:$0xf]
    %v850 = vld [vmem:[#allocation10 + $0x130] sm:$0xf]
    %v851 = vld [vmem:[#allocation10 + $0x148] sm:$0xf]
    %v852 = vld [vmem:[#allocation10 + $0x160] sm:$0xf]
    %v853 = vld [vmem:[#allocation10 + $0x178] sm:$0xf]
    %v854 = vpack.c.bf16 %v837, %v837
    %s855 = scalar_lea.vmem [#allocation11], 56
    %v856 = vld [vmem:[%s855] sm:$0xff]
    %v873 = vunpack.c.l.b16 %v838
    %v874 = vunpack.c.l.b16 %v839
    %v875 = vunpack.c.l.b16 %v840
    %v876 = vunpack.c.l.b16 %v841
    %v877 = vunpack.c.l.b16 %v842
    %v878 = vunpack.c.l.b16 %v843
    %v879 = vunpack.c.l.b16 %v844
    %v880 = vunpack.c.l.b16 %v845
    %v881 = vunpack.c.l.b16 %v846
    %v882 = vunpack.c.l.b16 %v847
    %v883 = vunpack.c.l.b16 %v848
    %v884 = vunpack.c.l.b16 %v849
    %v885 = vunpack.c.l.b16 %v850
    %v886 = vunpack.c.l.b16 %v851
    %v887 = vunpack.c.l.b16 %v852
    %v888 = vunpack.c.l.b16 %v853
    %v889 = vpack.c.b16 %v874, %v873
    %v890 = vpack.c.b16 %v876, %v875
    %v891 = vpack.c.b16 %v878, %v877
    %v892 = vpack.c.b16 %v880, %v879
    %v893 = vpack.c.b16 %v882, %v881
    %v894 = vpack.c.b16 %v884, %v883
    %v895 = vpack.c.b16 %v886, %v885
    %v896 = vpack.c.b16 %v888, %v887
    %905 = vmatprep.subr.bf16.mxu0 0
    %906 = vmatpush1.bf16.msra.mxu0 %v889
    %907 = vmatprep.subr.bf16.mxu0 0
    %908 = vmatpush1.bf16.msra.mxu0 %v890
    %909 = vmatprep.subr.bf16.mxu0 0
    %910 = vmatpush1.bf16.msra.mxu0 %v891
    %911 = vmatprep.subr.bf16.mxu0 0
    %912 = vmatpush1.bf16.msra.mxu0 %v892
    %913 = vmatprep.subr.bf16.mxu0 0
    %914 = vmatpush1.bf16.msra.mxu0 %v893
    %915 = vmatprep.subr.bf16.mxu0 0
    %916 = vmatpush1.bf16.msra.mxu0 %v894
    %917 = vmatprep.subr.bf16.mxu0 0
    %918 = vmatpush1.bf16.msra.mxu0 %v895
    %919 = vmatprep.subr.bf16.mxu0 0
    %920 = vmatpush1.bf16.msra.mxu0 %v896
    %921 = vmatprep.subr.bf16.mxu0 0
    %922 = vmatpush1.bf16.msra.mxu0 0
    %923 = vmatprep.subr.bf16.mxu0 0
    %924 = vmatpush1.bf16.msra.mxu0 0
    %925 = vmatprep.subr.bf16.mxu0 0
    %926 = vmatpush1.bf16.msra.mxu0 0
    %927 = vmatprep.subr.bf16.mxu0 0
    %928 = vmatpush1.bf16.msra.mxu0 0
    %929 = vmatprep.subr.bf16.mxu0 0
    %930 = vmatpush1.bf16.msra.mxu0 0
    %931 = vmatprep.subr.bf16.mxu0 0
    %932 = vmatpush1.bf16.msra.mxu0 0
    %933 = vmatprep.subr.bf16.mxu0 0
    %934 = vmatpush1.bf16.msra.mxu0 0
    %935 = vmatprep.subr.bf16.mxu0 0
    %936 = vmatpush1.bf16.msra.mxu0 0
    %937 = vmatprep.mubr.bf16.mxu0 0
    %938 = vmatmul.mubr.bf16.gmra.mrb[0].mxu0 %v854
    %v939 = vpop.f32.mrb[0].mxu0
    %v940 = vadd.f32 %v856, %v939
    %v941 = vpop.f32.mrb[0].mxu0
    %v942 = vpop.f32.mrb[0].mxu0
    %v943 = vpop.f32.mrb[0].mxu0
    %944 = vdwg.mxu0
    %v945 = vsub.f32 0.0, %v940
    %v946 = vmul.f32 %v945, 1.442695
    %v947 = vpow.pop %v946
    %v948 = vadd.f32 %v947, 1.0
    %v949 = vrcp.pop %v948
    %v950 = vmul.f32 %v948, %v949
    %v951 = vsub.f32 2.0, %v950
    %v952 = vmul.f32 %v949, %v951
    %v953 = vld [vmem:[#allocation10 + $0x14] sm:$0xf]
    %v954 = vld [vmem:[#allocation10 + $0x2c] sm:$0xf]
    %v955 = vld [vmem:[#allocation10 + $0x44] sm:$0xf]
    %v956 = vld [vmem:[#allocation10 + $0x5c] sm:$0xf]
    %v957 = vld [vmem:[#allocation10 + $0x74] sm:$0xf]
    %v958 = vld [vmem:[#allocation10 + $0x8c] sm:$0xf]
    %v959 = vld [vmem:[#allocation10 + $0xa4] sm:$0xf]
    %v960 = vld [vmem:[#allocation10 + $0xbc] sm:$0xf]
    %v961 = vld [vmem:[#allocation10 + $0xd4] sm:$0xf]
    %v962 = vld [vmem:[#allocation10 + $0xec] sm:$0xf]
    %v963 = vld [vmem:[#allocation10 + $0x104] sm:$0xf]
    %v964 = vld [vmem:[#allocation10 + $0x11c] sm:$0xf]
    %v965 = vld [vmem:[#allocation10 + $0x134] sm:$0xf]
    %v966 = vld [vmem:[#allocation10 + $0x14c] sm:$0xf]
    %v967 = vld [vmem:[#allocation10 + $0x164] sm:$0xf]
    %v968 = vld [vmem:[#allocation10 + $0x17c] sm:$0xf]
    %v969 = vpack.c.bf16 %v952, %v952
    %s970 = scalar_lea.vmem [#allocation11], 64
    %v971 = vld [vmem:[%s970] sm:$0xff]
    %v988 = vunpack.c.l.b16 %v953
    %v989 = vunpack.c.l.b16 %v954
    %v990 = vunpack.c.l.b16 %v955
    %v991 = vunpack.c.l.b16 %v956
    %v992 = vunpack.c.l.b16 %v957
    %v993 = vunpack.c.l.b16 %v958
    %v994 = vunpack.c.l.b16 %v959
    %v995 = vunpack.c.l.b16 %v960
    %v996 = vunpack.c.l.b16 %v961
    %v997 = vunpack.c.l.b16 %v962
    %v998 = vunpack.c.l.b16 %v963
    %v999 = vunpack.c.l.b16 %v964
    %v1000 = vunpack.c.l.b16 %v965
    %v1001 = vunpack.c.l.b16 %v966
    %v1002 = vunpack.c.l.b16 %v967
    %v1003 = vunpack.c.l.b16 %v968
    %v1004 = vpack.c.b16 %v989, %v988
    %v1005 = vpack.c.b16 %v991, %v990
    %v1006 = vpack.c.b16 %v993, %v992
    %v1007 = vpack.c.b16 %v995, %v994
    %v1008 = vpack.c.b16 %v997, %v996
    %v1009 = vpack.c.b16 %v999, %v998
    %v1010 = vpack.c.b16 %v1001, %v1000
    %v1011 = vpack.c.b16 %v1003, %v1002
    %1020 = vmatprep.subr.bf16.mxu0 0
    %1021 = vmatpush1.bf16.msra.mxu0 %v1004
    %1022 = vmatprep.subr.bf16.mxu0 0
    %1023 = vmatpush1.bf16.msra.mxu0 %v1005
    %1024 = vmatprep.subr.bf16.mxu0 0
    %1025 = vmatpush1.bf16.msra.mxu0 %v1006
    %1026 = vmatprep.subr.bf16.mxu0 0
    %1027 = vmatpush1.bf16.msra.mxu0 %v1007
    %1028 = vmatprep.subr.bf16.mxu0 0
    %1029 = vmatpush1.bf16.msra.mxu0 %v1008
    %1030 = vmatprep.subr.bf16.mxu0 0
    %1031 = vmatpush1.bf16.msra.mxu0 %v1009
    %1032 = vmatprep.subr.bf16.mxu0 0
    %1033 = vmatpush1.bf16.msra.mxu0 %v1010
    %1034 = vmatprep.subr.bf16.mxu0 0
    %1035 = vmatpush1.bf16.msra.mxu0 %v1011
    %1036 = vmatprep.subr.bf16.mxu0 0
    %1037 = vmatpush1.bf16.msra.mxu0 0
    %1038 = vmatprep.subr.bf16.mxu0 0
    %1039 = vmatpush1.bf16.msra.mxu0 0
    %1040 = vmatprep.subr.bf16.mxu0 0
    %1041 = vmatpush1.bf16.msra.mxu0 0
    %1042 = vmatprep.subr.bf16.mxu0 0
    %1043 = vmatpush1.bf16.msra.mxu0 0
    %1044 = vmatprep.subr.bf16.mxu0 0
    %1045 = vmatpush1.bf16.msra.mxu0 0
    %1046 = vmatprep.subr.bf16.mxu0 0
    %1047 = vmatpush1.bf16.msra.mxu0 0
    %1048 = vmatprep.subr.bf16.mxu0 0
    %1049 = vmatpush1.bf16.msra.mxu0 0
    %1050 = vmatprep.subr.bf16.mxu0 0
    %1051 = vmatpush1.bf16.msra.mxu0 0
    %1052 = vmatprep.mubr.bf16.mxu0 0
    %1053 = vmatmul.mubr.bf16.gmra.mrb[0].mxu0 %v969
    %v1054 = vpop.f32.mrb[0].mxu0
    %v1055 = vadd.f32 %v971, %v1054
    %v1056 = vpop.f32.mrb[0].mxu0
    %v1057 = vpop.f32.mrb[0].mxu0
    %v1058 = vpop.f32.mrb[0].mxu0
    %1059 = vdwg.mxu0
    %v1060 = vsub.f32 0.0, %v1055
    %v1061 = vmul.f32 %v1060, 1.442695
    %v1062 = vpow.pop %v1061
    %v1063 = vadd.f32 %v1062, 1.0
    %v1064 = vrcp.pop %v1063
    %v1065 = vmul.f32 %v1063, %v1064
    %v1066 = vsub.f32 2.0, %v1065
    %v1067 = vmul.f32 %v1064, %v1066
    %1068 = vst [vmem:[#allocation13] sm:$0xff] %v1067
    %1069 = vst [vmem:[#allocation13 + $0x8] sm:$0xff] %v508
    %1070 = vst [vmem:[#allocation13 + $0x10] sm:$0xff] %v614
    // Predicated region
    $region50: #{tpu_custom_call.1} parent=1 // pred_check
      _
    $region51: #{tpu_custom_call.1} parent=1 // pred_check_branch
      %1072 = sbr.rel (0) target = $region53
    $region52: #{tpu_custom_call.1} parent=1 // pred_region
      %s1074 = ssub.s32 384, 384
      %1075 = vsyncadd [#allocation4], %s1074
      %s1077 = sshll.u32 [#allocation13], 4
      %s1078 = int_to_ptr.vmem [resolvable:$true] %s1077
      %1080 = dma.vmem_to_hbm [thread:$0]  %s1078, 384, %s6, [#allocation4]
    $region53: #{tpu_custom_call.1} parent=1 // pred_fallthru
      _
    // Predicated region
    $region54: #{tpu_custom_call.1} parent=1 // pred_check
      _
    $region55: #{tpu_custom_call.1} parent=1 // pred_check_branch
      %1082 = sbr.rel (0) target = $region57
    $region56: #{tpu_custom_call.1} parent=1 // pred_region
      %1083 = dma.done [#allocation4], 384
    $region57: #{tpu_custom_call.1} parent=1 // pred_fallthru
      _
    %1084 = vsyncpa [#allocation3], 1
    %1085 = vsyncpa [#allocation6], 1
    %1086 = vsyncpa [#allocation9], 1
    %1087 = vsyncpa [#allocation12], 1
    %1088 = vsyncpa [#allocation4], 1

</llo_original>
